<compile_context>
chip_gen: v7x
topology: tpu7x:2x2x1
jax: 0.10.0
libtpu: 0.0.40
codegen_flags: <defaults>
</compile_context>

<pallas_src>
import jax
import jax.numpy as jnp
from jax.experimental import pallas as pl
from jax.experimental.pallas import tpu as pltpu


def _nw_kernel(w_ref, q_ref, k_ref, v_ref, o_ref):
    # w_ref : SMEM (1,)      scalar parameter
    # q_ref : VMEM (tn, 1)   queries (row tile)
    # k_ref : VMEM (tn, M)   keys    (row tile)
    # v_ref : VMEM (tn, M)   values  (row tile)
    # o_ref : VMEM (tn, 1)   output  (row tile)
    w = w_ref[0]
    coef = w * w * (-0.5)                       # scalar, computed once per tile

    q = q_ref[...].astype(jnp.float32)          # (tn, 1) broadcasts over lanes
    k = k_ref[...].astype(jnp.float32)          # (tn, M)
    v = v_ref[...].astype(jnp.float32)          # (tn, M)

    # scores = -((q - k) * w)^2 / 2 = (q - k)^2 * coef   (coef <= 0)
    d = q - k
    # scores <= 0  =>  exp(scores) in (0, 1]: no overflow, max-subtract skipped.
    p = jnp.exp(d * d * coef)                   # (tn, M)

    num = jnp.sum(p * v, axis=1, keepdims=True)   # (tn, 1)
    den = jnp.sum(p, axis=1, keepdims=True)       # (tn, 1)
    # epsilon only matters if every key is so far away that exp underflows to 0
    den = den + 1e-30

    # approx reciprocal (EUP) + one Newton step to recover full f32 accuracy
    r = pl.reciprocal(den, approx=True)
    r = r * (2.0 - den * r)

    o_ref[...] = num * r


def _round_up(x, mult):
    return ((x + mult - 1) // mult) * mult


def _vmem_capacity_bytes():
    # Generation-aware physical VMEM (128 MiB on v5e/v6e, 64 MiB/TC on v7x).
    try:
        info = pltpu.get_tpu_info()
        cap = getattr(info, "vmem_capacity_bytes", None)
        if cap:
            return int(cap)
    except Exception:
        pass
    return 64 * 1024 * 1024  # conservative default (v7x per-TensorCore VMEM)


def nw_kernel_regression(w, queries, keys, values):
    """w: (1,) float, queries: (N,), keys/values: (N, M) [f32 or bf16] -> (N,) f32."""
    n, m = keys.shape

    # ---- generation-aware VMEM budget -------------------------------------
    vmem_cap = _vmem_capacity_bytes()
    # <= ~48 MiB on v7x (64 MiB VMEM), 96 MiB on v5e/v6e (128 MiB VMEM).
    vmem_limit = min((vmem_cap * 3) // 4, 96 * 1024 * 1024)
    tile_budget = vmem_limit - 4 * 1024 * 1024          # margin for compiler scratch

    # ---- per-row VMEM cost with lane padding ------------------------------
    m_pad = _round_up(m, 128)
    in_bytes = jnp.dtype(keys.dtype).itemsize           # 4 (f32) or 2 (bf16)
    per_row = (
        2 * 2 * in_bytes * m_pad      # keys + values, double-buffered
        + 2 * 2 * 4 * 128             # (tn,1) queries + output blocks, 128-lane padded
        + 2 * 4 * m_pad               # f32 elementwise intermediates (d, p) headroom
    )
    tn_cap = max(8, ((tile_budget // per_row) // 8) * 8)

    # ---- grid shaping: keep >= 4 steps when N allows, minimize tail pad ----
    n_pad8 = _round_up(n, 8)
    min_tiles = max(1, min(4, n_pad8 // 8))              # >=4 tiles once N >= 32 rows
    num_tiles = max(-(-n_pad8 // tn_cap), min_tiles)     # ceil-div, but never < min_tiles
    tn = _round_up(-(-n_pad8 // num_tiles), 8)           # round_up(cdiv(n, tiles), 8)
    n_pad = num_tiles * tn                               # >= n_pad8 >= n

    # ---- pad rows so the grid divides evenly (padded rows discarded below) -
    q2 = queries.reshape(n, 1)
    k2 = keys
    v2 = values
    if n_pad != n:
        q2 = jnp.pad(q2, ((0, n_pad - n), (0, 0)))
        k2 = jnp.pad(k2, ((0, n_pad - n), (0, 0)))
        v2 = jnp.pad(v2, ((0, n_pad - n), (0, 0)))
    w1 = w.reshape(1).astype(jnp.float32)

    out = pl.pallas_call(
        _nw_kernel,
        out_shape=jax.ShapeDtypeStruct((n_pad, 1), jnp.float32),
        grid=(num_tiles,),
        in_specs=[
            pl.BlockSpec(memory_space=pltpu.SMEM),     # w (scalar param)
            pl.BlockSpec((tn, 1), lambda i: (i, 0)),   # queries
            pl.BlockSpec((tn, m), lambda i: (i, 0)),   # keys
            pl.BlockSpec((tn, m), lambda i: (i, 0)),   # values
        ],
        out_specs=pl.BlockSpec((tn, 1), lambda i: (i, 0)),
        compiler_params=pltpu.CompilerParams(
            dimension_semantics=("parallel",),
            vmem_limit_bytes=vmem_limit,
        ),
    )(w1, q2, k2, v2)
    return out[:n, 0]


def _f(x):
    return 2.0 * jnp.sin(x) + x ** 0.8


def _reference(w, queries, keys, values):
    q = jnp.broadcast_to(queries.reshape(-1, 1), keys.shape)
    s = -(((q - keys.astype(jnp.float32)) * w[0]) ** 2) / 2.0
    attn = jax.nn.softmax(s, axis=1)
    return jnp.sum(attn * values.astype(jnp.float32), axis=1)


if __name__ == "__main__":
    key = jax.random.PRNGKey(0)
    k_w, k_x, k_noise = jax.random.split(key, 3)

    n_train = 50
    # deterministic synthetic data mirroring the d2l setup
    x_train = jnp.sort(jax.random.uniform(k_x, (n_train,), dtype=jnp.float32) * 5.0)
    y_train = _f(x_train) + 0.5 * jax.random.normal(k_noise, (n_train,), dtype=jnp.float32)

    x_test = jnp.arange(0.0, 5.0, 0.1, dtype=jnp.float32)  # (50,)
    n_test = x_test.shape[0]

    # keys / values: each test query attends over all training points
    keys = jnp.tile(x_train[None, :], (n_test, 1))    # (50, 50)
    values = jnp.tile(y_train[None, :], (n_test, 1))  # (50, 50)

    # parameter: w ~ U[0,1), shape (1,)  (matches nn.Parameter(torch.rand((1,))))
    w = jax.random.uniform(k_w, (1,), dtype=jnp.float32)

    out = nw_kernel_regression(w, x_test, keys, values)
    out = jax.block_until_ready(out)

    ref = _reference(w, x_test, keys, values)
    assert out.shape == (n_test,)
    assert jnp.allclose(out, ref, atol=1e-5, rtol=1e-5), (out, ref)

    print("KERNEL_OK")
</pallas_src>

<mosaic_0001>
module attributes {stable_mosaic.version = 11 : i64} {
  func.func @_nw_kernel(%arg0: i32, %arg1: memref<1xf32, #tpu.memory_space<smem>>, %arg2: memref<16x1xf32, #tpu.memory_space<vmem>>, %arg3: memref<16x50xf32, #tpu.memory_space<vmem>>, %arg4: memref<16x50xf32, #tpu.memory_space<vmem>>, %arg5: memref<16x1xf32, #tpu.memory_space<vmem>>) attributes {dimension_semantics = [#tpu.dimension_semantics<parallel>], iteration_bounds = array<i64: 4>, scalar_prefetch = 0 : i64, scratch_operands = 0 : i64, tpu.core_type = #tpu.core_type<tc>, window_params = [{transform_indices = @transform_0, window_bounds = array<i64: 1>}, {transform_indices = @transform_1, window_bounds = array<i64: 16, 1>}, {transform_indices = @transform_2, window_bounds = array<i64: 16, 50>}, {transform_indices = @transform_3, window_bounds = array<i64: 16, 50>}, {transform_indices = @transform_4, window_bounds = array<i64: 16, 1>}]} {
    %c0 = arith.constant 0 : index
    %0 = memref.load %arg1[%c0] : memref<1xf32, #tpu.memory_space<smem>>
    %1 = arith.mulf %0, %0 : f32
    %cst = arith.constant -5.000000e-01 : f32
    %2 = arith.mulf %1, %cst : f32
    %c0_0 = arith.constant 0 : index
    %c0_1 = arith.constant 0 : index
    %3 = vector.load %arg2[%c0_0, %c0_1] : memref<16x1xf32, #tpu.memory_space<vmem>>, vector<16x1xf32>
    %c0_2 = arith.constant 0 : index
    %c0_3 = arith.constant 0 : index
    %4 = vector.load %arg3[%c0_2, %c0_3] : memref<16x50xf32, #tpu.memory_space<vmem>>, vector<16x50xf32>
    %c0_4 = arith.constant 0 : index
    %c0_5 = arith.constant 0 : index
    %5 = vector.load %arg4[%c0_4, %c0_5] : memref<16x50xf32, #tpu.memory_space<vmem>>, vector<16x50xf32>
    %6 = vector.broadcast %3 : vector<16x1xf32> to vector<16x50xf32>
    %7 = arith.subf %6, %4 : vector<16x50xf32>
    %8 = arith.mulf %7, %7 : vector<16x50xf32>
    %9 = vector.broadcast %2 : f32 to vector<16x50xf32>
    %10 = arith.mulf %8, %9 : vector<16x50xf32>
    %11 = math.exp %10 : vector<16x50xf32>
    %12 = arith.mulf %11, %5 : vector<16x50xf32>
    %cst_6 = arith.constant dense<0.000000e+00> : vector<16xf32>
    %13 = vector.multi_reduction <add>, %12, %cst_6 [1] : vector<16x50xf32> to vector<16xf32>
    %14 = vector.shape_cast %13 : vector<16xf32> to vector<16x1xf32>
    %cst_7 = arith.constant dense<0.000000e+00> : vector<16xf32>
    %15 = vector.multi_reduction <add>, %11, %cst_7 [1] : vector<16x50xf32> to vector<16xf32>
    %16 = vector.shape_cast %15 : vector<16xf32> to vector<16x1xf32>
    %cst_8 = arith.constant 1.000000e-30 : f32
    %17 = vector.broadcast %cst_8 : f32 to vector<16x1xf32>
    %18 = arith.addf %16, %17 : vector<16x1xf32>
    %19 = tpu.reciprocal %18 {approx = true} : vector<16x1xf32> -> vector<16x1xf32>
    %20 = arith.mulf %18, %19 : vector<16x1xf32>
    %cst_9 = arith.constant 2.000000e+00 : f32
    %21 = vector.broadcast %cst_9 : f32 to vector<16x1xf32>
    %22 = arith.subf %21, %20 : vector<16x1xf32>
    %23 = arith.mulf %19, %22 : vector<16x1xf32>
    %24 = arith.mulf %14, %23 : vector<16x1xf32>
    %c0_10 = arith.constant 0 : index
    %c0_11 = arith.constant 0 : index
    %25 = vector.load %arg5[%c0_10, %c0_11] : memref<16x1xf32, #tpu.memory_space<vmem>>, vector<16x1xf32>
    tpu.vector_store %arg5[%c0_10, %c0_11], %24 {strides = array<i32>} : memref<16x1xf32, #tpu.memory_space<vmem>>, vector<16x1xf32>,
    return
  }
  func.func @transform_0(%arg0: i32) -> i32 {
    %c0_i32 = arith.constant 0 : i32
    %c0_i32_0 = arith.constant 0 : i32
    return %c0_i32 : i32
  }
  func.func @transform_1(%arg0: i32) -> (i32, i32) {
    %c0_i32 = arith.constant 0 : i32
    %c0_i32_0 = arith.constant 0 : i32
    return %arg0, %c0_i32 : i32, i32
  }
  func.func @transform_2(%arg0: i32) -> (i32, i32) {
    %c0_i32 = arith.constant 0 : i32
    %c0_i32_0 = arith.constant 0 : i32
    return %arg0, %c0_i32 : i32, i32
  }
  func.func @transform_3(%arg0: i32) -> (i32, i32) {
    %c0_i32 = arith.constant 0 : i32
    %c0_i32_0 = arith.constant 0 : i32
    return %arg0, %c0_i32 : i32, i32
  }
  func.func @transform_4(%arg0: i32) -> (i32, i32) {
    %c0_i32 = arith.constant 0 : i32
    %c0_i32_0 = arith.constant 0 : i32
    return %arg0, %c0_i32 : i32, i32
  }
}

</mosaic_0001>

<llo_original>
// kernel: tpu_custom_call.1
$region0: #{tpu_custom_call.1}
  #allocation0 [shape = 'u32[]', space=smem, size = 0x4, offset = 0x4, fixed_abs, tag = 'smem constant byte address 0x4 - core index']
  #allocation1 [shape = 'u32[144,128]{1,0:T(1,128)}', space=vmem, size = 0x12000, scoped, tag = 'internal scratch']
  #allocation2 [shape = 'f32[1]{0:T(128)S(6)}', space=smem, size = 0x200, scoped, tag = 'scoped memory for tpu_custom_call.1']
  %s0 = inlined_call_operand.<no memory space> [shape: f32[1], index: 0, kind: input, shape index: {}]
  %s1 = inlined_call_operand.vmem [shape: f32[64,1], index: 1, kind: input, shape index: {}]
  %s2 = inlined_call_operand.vmem [shape: f32[64,50], index: 2, kind: input, shape index: {}]
  %s3 = inlined_call_operand.vmem [shape: f32[64,50], index: 3, kind: input, shape index: {}]
  %s4 = inlined_call_operand.vmem [shape: f32[64,1], index: 4, kind: output, shape index: {}]
  %s5 = sld [smem:[#allocation0]]
  $region49: #{tpu_custom_call.1} parent=0
    _
  %s7 = ssub.s32 1, %s5
  %s8 = scalar_select 0, %s7, %s5
  %9 = sst [smem:[#allocation2]] %s0
  loop: start=0, step=1, limit=6
  $region2: #{tpu_custom_call.1} parent=0 // loop_pre_header
    _
  $region3: #{tpu_custom_call.1} parent=0 // loop_header
    %s11 = sphi 0, %s15
    %p12 = scmp.ge.s32.totalorder %s11, 6
    %s19 = sphi 0, %s19
    %s21 = sphi 0, %s19
    %s22 = sphi 0, %s21
    %s36 = sphi 0, %s22
    %s42 = sphi 0, %s44
    %s45 = sphi 0, %s42
    %s46 = sphi 0, %s45
    %s62 = sphi 0, %s46
    %s68 = sphi 0, %s70
    %s71 = sphi 0, %s68
    %s72 = sphi 0, %s71
    %s88 = sphi 0, %s72
    %s94 = sphi 0, %s96
    %s97 = sphi 0, %s94
    %s98 = sphi 0, %s97
    %s114 = sphi 0, %s98
    %s120 = sphi 0, %s122
    %s123 = sphi 0, %s120
    %s124 = sphi 0, %s123
    %s140 = sphi 0, %s124
  $region4: #{tpu_custom_call.1} parent=0 // loop_header_branch
    %14 = sbr.rel (%p12) target = $region8
  $region5: #{tpu_custom_call.1} parent=0 // loop_body
    %s16 = ssub.s32 %s11, 1
    %s17 = ssub.s32 %s11, 2
    %s18 = sadd.s32 %s11, 1
    %s20 = sadd.s32 %s19, 1
    %p23 = scmp.eq.s32.totalorder %s11, 3
    %p24 = scmp.ne.s32.totalorder %s19, %s21
    %p25 = scmp.eq.s32.totalorder %s11, 0
    %p26 = por %p24, %p25
    %p27 = scmp.ne.s32.totalorder %s19, %s21
    %p28 = scmp.eq.s32.totalorder %s16, 3
    %p29 = por %p27, %p28
    %p30 = scmp.ne.s32.totalorder %s21, %s22
    %p31 = scmp.eq.s32.totalorder %s16, 0
    %p32 = por %p30, %p31
    %p33 = scmp.ne.s32.totalorder %s21, %s22
    %p34 = scmp.eq.s32.totalorder %s17, 3
    %p35 = por %p33, %p34
    %p37 = scmp.ne.s32.totalorder %s22, %s36
    %p38 = scmp.eq.s32.totalorder %s17, 0
    %p39 = por %p37, %p38
    %s40 = ssub.s32 %s11, %s18
    %p41 = scmp.eq.s32.totalorder %s40, 0
    %s43 = sadd.s32 %s42, 1
    %s44 = scalar_select %p41, %s42, %s43
    %p47 = pneg %p41
    %p48 = scmp.eq.s32.totalorder %s11, 3
    %p49 = por %p47, %p48
    %p50 = scmp.ne.s32.totalorder %s42, %s45
    %p51 = scmp.eq.s32.totalorder %s11, 0
    %p52 = por %p50, %p51
    %p53 = scmp.ne.s32.totalorder %s42, %s45
    %p54 = scmp.eq.s32.totalorder %s16, 3
    %p55 = por %p53, %p54
    %p56 = scmp.ne.s32.totalorder %s45, %s46
    %p57 = scmp.eq.s32.totalorder %s16, 0
    %p58 = por %p56, %p57
    %p59 = scmp.ne.s32.totalorder %s45, %s46
    %p60 = scmp.eq.s32.totalorder %s17, 3
    %p61 = por %p59, %p60
    %p63 = scmp.ne.s32.totalorder %s46, %s62
    %p64 = scmp.eq.s32.totalorder %s17, 0
    %p65 = por %p63, %p64
    %s66 = ssub.s32 %s11, %s18
    %p67 = scmp.eq.s32.totalorder %s66, 0
    %s69 = sadd.s32 %s68, 1
    %s70 = scalar_select %p67, %s68, %s69
    %p73 = pneg %p67
    %p74 = scmp.eq.s32.totalorder %s11, 3
    %p75 = por %p73, %p74
    %p76 = scmp.ne.s32.totalorder %s68, %s71
    %p77 = scmp.eq.s32.totalorder %s11, 0
    %p78 = por %p76, %p77
    %p79 = scmp.ne.s32.totalorder %s68, %s71
    %p80 = scmp.eq.s32.totalorder %s16, 3
    %p81 = por %p79, %p80
    %p82 = scmp.ne.s32.totalorder %s71, %s72
    %p83 = scmp.eq.s32.totalorder %s16, 0
    %p84 = por %p82, %p83
    %p85 = scmp.ne.s32.totalorder %s71, %s72
    %p86 = scmp.eq.s32.totalorder %s17, 3
    %p87 = por %p85, %p86
    %p89 = scmp.ne.s32.totalorder %s72, %s88
    %p90 = scmp.eq.s32.totalorder %s17, 0
    %p91 = por %p89, %p90
    %s92 = ssub.s32 %s11, %s18
    %p93 = scmp.eq.s32.totalorder %s92, 0
    %s95 = sadd.s32 %s94, 1
    %s96 = scalar_select %p93, %s94, %s95
    %p99 = pneg %p93
    %p100 = scmp.eq.s32.totalorder %s11, 3
    %p101 = por %p99, %p100
    %p102 = scmp.ne.s32.totalorder %s94, %s97
    %p103 = scmp.eq.s32.totalorder %s11, 0
    %p104 = por %p102, %p103
    %p105 = scmp.ne.s32.totalorder %s94, %s97
    %p106 = scmp.eq.s32.totalorder %s16, 3
    %p107 = por %p105, %p106
    %p108 = scmp.ne.s32.totalorder %s97, %s98
    %p109 = scmp.eq.s32.totalorder %s16, 0
    %p110 = por %p108, %p109
    %p111 = scmp.ne.s32.totalorder %s97, %s98
    %p112 = scmp.eq.s32.totalorder %s17, 3
    %p113 = por %p111, %p112
    %p115 = scmp.ne.s32.totalorder %s98, %s114
    %p116 = scmp.eq.s32.totalorder %s17, 0
    %p117 = por %p115, %p116
    %s118 = ssub.s32 %s11, %s18
    %p119 = scmp.eq.s32.totalorder %s118, 0
    %s121 = sadd.s32 %s120, 1
    %s122 = scalar_select %p119, %s120, %s121
    %p125 = pneg %p119
    %p126 = scmp.eq.s32.totalorder %s11, 3
    %p127 = por %p125, %p126
    %p128 = scmp.ne.s32.totalorder %s120, %s123
    %p129 = scmp.eq.s32.totalorder %s11, 0
    %p130 = por %p128, %p129
    %p131 = scmp.ne.s32.totalorder %s120, %s123
    %p132 = scmp.eq.s32.totalorder %s16, 3
    %p133 = por %p131, %p132
    %p134 = scmp.ne.s32.totalorder %s123, %s124
    %p135 = scmp.eq.s32.totalorder %s16, 0
    %p136 = por %p134, %p135
    %p137 = scmp.ne.s32.totalorder %s123, %s124
    %p138 = scmp.eq.s32.totalorder %s17, 3
    %p139 = por %p137, %p138
    %p141 = scmp.ne.s32.totalorder %s124, %s140
    %p142 = scmp.eq.s32.totalorder %s17, 0
    %p143 = por %p141, %p142
    %p144 = scmp.le.s32.totalorder 1, %s11
    %p145 = scmp.lt.s32.totalorder %s11, 5
    %p146 = pnand %p144, %p145
    %p147 = pneg %p146
    // Predicated region
    $region9: #{tpu_custom_call.1} parent=5 // pred_check
      _
    $region10: #{tpu_custom_call.1} parent=5 // pred_check_branch
      %149 = sbr.rel (%p146) target = $region12
    $region11: #{tpu_custom_call.1} parent=5 // pred_region
      %s150 = ssub.s32 %s11, 1
      // Predicated region
      $region13: #{tpu_custom_call.1} parent=11 // pred_check
        %p151 = pneg %p32
      $region14: #{tpu_custom_call.1} parent=11 // pred_check_branch
        %153 = sbr.rel (%p151) target = $region16
      $region15: #{tpu_custom_call.1} parent=11 // pred_region
        _
      $region16: #{tpu_custom_call.1} parent=11 // pred_fallthru
        _
    $region12: #{tpu_custom_call.1} parent=5 // pred_fallthru
      _
    %p154 = scmp.lt.s32.totalorder %s11, 4
    // Predicated region
    $region17: #{tpu_custom_call.1} parent=5 // pred_check
      %p155 = pneg %p154
    $region18: #{tpu_custom_call.1} parent=5 // pred_check_branch
      %157 = sbr.rel (%p155) target = $region20
    $region19: #{tpu_custom_call.1} parent=5 // pred_region
      // Predicated region
      $region21: #{tpu_custom_call.1} parent=19 // pred_check
        %p158 = pneg %p52
      $region22: #{tpu_custom_call.1} parent=19 // pred_check_branch
        %160 = sbr.rel (%p158) target = $region24
      $region23: #{tpu_custom_call.1} parent=19 // pred_region
        %s161 = smul.u32 2, %s11
        %p162 = scmp.lt.s32.totalorder %s161, 7
        %s163 = scalar_select %p162, %s161, 7
        %s164 = smul.addr %s163, 8
        %s165 = scalar_lea.vmem %s1, %s164
        %s166 = smul.u32 2, %s11
      $region24: #{tpu_custom_call.1} parent=19 // pred_fallthru
        _
      // Predicated region
      $region25: #{tpu_custom_call.1} parent=19 // pred_check
        %p167 = pneg %p78
      $region26: #{tpu_custom_call.1} parent=19 // pred_check_branch
        %169 = sbr.rel (%p167) target = $region28
      $region27: #{tpu_custom_call.1} parent=19 // pred_region
        %s170 = smul.u32 2, %s11
        %p171 = scmp.lt.s32.totalorder %s170, 7
        %s172 = scalar_select %p171, %s170, 7
        %s173 = smul.addr %s172, 8
        %s174 = scalar_lea.vmem %s2, %s173
        %s175 = smul.u32 2, %s11
      $region28: #{tpu_custom_call.1} parent=19 // pred_fallthru
        _
      // Predicated region
      $region29: #{tpu_custom_call.1} parent=19 // pred_check
        %p176 = pneg %p104
      $region30: #{tpu_custom_call.1} parent=19 // pred_check_branch
        %178 = sbr.rel (%p176) target = $region32
      $region31: #{tpu_custom_call.1} parent=19 // pred_region
        %s179 = smul.u32 2, %s11
        %p180 = scmp.lt.s32.totalorder %s179, 7
        %s181 = scalar_select %p180, %s179, 7
        %s182 = smul.addr %s181, 8
        %s183 = scalar_lea.vmem %s3, %s182
        %s184 = smul.u32 2, %s11
      $region32: #{tpu_custom_call.1} parent=19 // pred_fallthru
        _
    $region20: #{tpu_custom_call.1} parent=5 // pred_fallthru
      _
    %p185 = scmp.le.s32.totalorder 1, %s11
    %p186 = scmp.lt.s32.totalorder %s11, 5
    %p187 = pnand %p185, %p186
    %p188 = pneg %p187
    // Predicated region
    $region33: #{tpu_custom_call.1} parent=5 // pred_check
      _
    $region34: #{tpu_custom_call.1} parent=5 // pred_check_branch
      %190 = sbr.rel (%p187) target = $region36
    $region35: #{tpu_custom_call.1} parent=5 // pred_region
      %s191 = ssub.s32 %s11, 1
      %p192 = pneg %p32
      %p193 = pneg %p29
      %s194 = smul.u32 2, %s16
      %p195 = scmp.lt.s32.totalorder %s194, 7
      %s196 = scalar_select %p195, %s194, 7
      %s197 = smul.addr %s196, 8
      %s198 = scalar_lea.vmem %s1, %s197
      %p199 = pneg %p58
      %p200 = pneg %p55
      %s201 = smul.u32 2, %s16
      %p202 = scmp.lt.s32.totalorder %s201, 7
      %s203 = scalar_select %p202, %s201, 7
      %s204 = smul.addr %s203, 8
      %s205 = scalar_lea.vmem %s2, %s204
      %p206 = pneg %p84
      %p207 = pneg %p81
      %s208 = smul.u32 2, %s16
      %p209 = scmp.lt.s32.totalorder %s208, 7
      %s210 = scalar_select %p209, %s208, 7
      %s211 = smul.addr %s210, 8
      %s212 = scalar_lea.vmem %s3, %s211
      %p213 = pneg %p110
      %p214 = pneg %p107
      %p215 = pneg %p136
      %p216 = pneg %p133
      %s217 = smul.u32 2, %s16
      %p218 = scmp.lt.s32.totalorder %s217, 7
      %s219 = scalar_select %p218, %s217, 7
      %s220 = smul.addr %s219, 8
      %s221 = scalar_lea.vmem %s4, %s220
      %s222 = smul.u32 2, %s16
      %p223 = scmp.lt.s32.totalorder %s222, 7
      %s224 = scalar_select %p223, %s222, 7
      %s225 = smul.addr %s224, 8
      %s226 = scalar_lea.vmem %s1, %s225
      %s227 = smul.u32 2, %s16
      %s228 = smul.u32 2, %s16
      %p229 = scmp.lt.s32.totalorder %s228, 7
      %s230 = scalar_select %p229, %s228, 7
      %s231 = smul.addr %s230, 8
      %s232 = scalar_lea.vmem %s2, %s231
      %s233 = smul.u32 2, %s16
      %s234 = smul.u32 2, %s16
      %p235 = scmp.lt.s32.totalorder %s234, 7
      %s236 = scalar_select %p235, %s234, 7
      %s237 = smul.addr %s236, 8
      %s238 = scalar_lea.vmem %s3, %s237
      %s239 = smul.u32 2, %s16
      %s240 = smul.u32 2, %s16
      %p241 = scmp.lt.s32.totalorder %s240, 7
      %s242 = scalar_select %p241, %s240, 7
      %s243 = smul.addr %s242, 8
      %s244 = scalar_lea.vmem %s4, %s243
      %s245 = smul.u32 2, %s16
      %s246 = sld [smem:[#allocation2]]
      %s247 = smul.f32 %s246, %s246
      %s248 = smul.f32 %s247, -0.5
      %v249 = vld [vmem:[%s226] sm:$0xff]
      %v250 = vld [vmem:[%s226 + $0x8] sm:$0xff]
      %v251 = vld [vmem:[%s232] sm:$0xff]
      %v252 = vld [vmem:[%s232 + $0x8] sm:$0xff]
      %v253 = vld [vmem:[%s238] sm:$0xff]
      %v254 = vld [vmem:[%s238 + $0x8] sm:$0xff]
      %256 = vset.pattern.permute.xlu0 0
      %257 = vperm.xlu0 %256, %v249
      %v258 = vpop.permute.xlu0 %257
      %261 = vset.pattern.permute.xlu0 0
      %262 = vperm.xlu0 %261, %v250
      %v263 = vpop.permute.xlu0 %262
      %v265 = vsub.f32 %v258, %v251
      %v266 = vsub.f32 %v263, %v252
      %v267 = vmul.f32 %v265, %v265
      %v268 = vmul.f32 %v266, %v266
      %v269 = vstv %s248
      %v270 = vmul.f32 %v267, %v269
      %v271 = vmul.f32 %v268, %v269
      %v272 = vmul.f32 %v270, 1.442695
      %v273 = vpow.pop %v272
      %v274 = vmul.f32 %v271, 1.442695
      %v275 = vpow.pop %v274
      %v276 = vmul.f32 %v273, %v253
      %v277 = vmul.f32 %v275, %v254
      %vm278 = vcmask 408576
      %v279 = vsel %vm278, %v276, 0.0
      %280 = vadd.xlane.f32.xlu0 %v279
      %v281 = vpop.xlane.xlu0 %280
      %v282 = vsel %vm278, %v277, 0.0
      %283 = vadd.xlane.f32.xlu0 %v282
      %v284 = vpop.xlane.xlu0 %283
      %v285 = vsel %vm278, %v273, 0.0
      %286 = vadd.xlane.f32.xlu0 %v285
      %v287 = vpop.xlane.xlu0 %286
      %v288 = vsel %vm278, %v275, 0.0
      %289 = vadd.xlane.f32.xlu0 %v288
      %v290 = vpop.xlane.xlu0 %289
      %v291 = vadd.f32 %v287, 1e-30
      %v292 = vadd.f32 %v290, 1e-30
      %v293 = vrcp.pop %v291
      %v294 = vrcp.pop %v292
      %v295 = vmul.f32 %v291, %v293
      %v296 = vmul.f32 %v292, %v294
      %v297 = vsub.f32 2.0, %v295
      %v298 = vsub.f32 2.0, %v296
      %v299 = vmul.f32 %v293, %v297
      %v300 = vmul.f32 %v294, %v298
      %v301 = vmul.f32 %v281, %v299
      %v302 = vmul.f32 %v284, %v300
      %vm303 = vcmask 7168
      %304 = vst.msk [vmem:[%s244] sm:$0xff] %vm303, %v301
      %305 = vst.msk [vmem:[%s244 + $0x8] sm:$0xff] %vm303, %v302
      %s306 = smul.u32 2, %s16
      %p307 = scmp.lt.s32.totalorder %s306, 7
      %s308 = scalar_select %p307, %s306, 7
      %s309 = smul.addr %s308, 8
      %s310 = scalar_lea.vmem %s4, %s309
      // Predicated region
      $region37: #{tpu_custom_call.1} parent=35 // pred_check
        %p311 = pneg %p133
      $region38: #{tpu_custom_call.1} parent=35 // pred_check_branch
        %313 = sbr.rel (%p311) target = $region40
      $region39: #{tpu_custom_call.1} parent=35 // pred_region
        %s314 = smul.u32 2, %s16
      $region40: #{tpu_custom_call.1} parent=35 // pred_fallthru
        _
    $region36: #{tpu_custom_call.1} parent=5 // pred_fallthru
      _
    %p315 = scmp.le.s32.totalorder 2, %s11
    // Predicated region
    $region41: #{tpu_custom_call.1} parent=5 // pred_check
      %p316 = pneg %p315
    $region42: #{tpu_custom_call.1} parent=5 // pred_check_branch
      %318 = sbr.rel (%p316) target = $region44
    $region43: #{tpu_custom_call.1} parent=5 // pred_region
      %s319 = ssub.s32 %s11, 2
      // Predicated region
      $region45: #{tpu_custom_call.1} parent=43 // pred_check
        %p320 = pneg %p139
      $region46: #{tpu_custom_call.1} parent=43 // pred_check_branch
        %322 = sbr.rel (%p320) target = $region48
      $region47: #{tpu_custom_call.1} parent=43 // pred_region
        %s323 = smul.u32 2, %s17
        %p324 = scmp.lt.s32.totalorder %s323, 7
        %s325 = scalar_select %p324, %s323, 7
        %s326 = smul.addr %s325, 8
        %s327 = scalar_lea.vmem %s4, %s326
      $region48: #{tpu_custom_call.1} parent=43 // pred_fallthru
        _
    $region44: #{tpu_custom_call.1} parent=5 // pred_fallthru
      _
  $region6: #{tpu_custom_call.1} parent=0 // loop_footer
    %s15 = sadd.s32 1, %s11
  $region7: #{tpu_custom_call.1} parent=0 // loop_footer_branch
    %10 = sbr.rel target = $region3
  $region8: #{tpu_custom_call.1} parent=0 // loop_exit
    _

</llo_original>
